<compile_context>
chip_gen: v6e
topology: v6e:2x2x1
jax: 0.10.0
libtpu: 0.0.40
codegen_flags: <defaults>
</compile_context>

<pallas_src>
import functools

import jax
import jax.numpy as jnp
from jax.experimental import pallas as pl
from jax.experimental.pallas import tpu as pltpu

_MIB = 1024 * 1024


def _ce_partial_sum_kernel(pred_ref, label_ref, psum_ref, *, n_total, tile_n, needs_mask):
    # pred_ref: (tile_n, C) native dtype; label_ref: (tile_n, 1) int32
    # psum_ref: (1, 1) f32 -- partial NLL sum over the valid rows of this tile.
    logits = pred_ref[...].astype(jnp.float32)   # upcast once in VMEM (v5e: no bf16 VPU/EUP)
    tn, c = logits.shape

    # numerically stable log-sum-exp; `shifted` reused for both lse and label pick
    row_max = jnp.max(logits, axis=-1, keepdims=True)                    # (tn, 1)
    shifted = logits - row_max                                           # (tn, C)
    lse = jnp.log(jnp.sum(jnp.exp(shifted), axis=-1, keepdims=True))     # (tn, 1), rel. to max

    # pick the (shifted) logit at the label index via iota-compare + select
    col_ids = jax.lax.broadcasted_iota(jnp.int32, (tn, c), 1)
    picked = jnp.sum(jnp.where(col_ids == label_ref[...], shifted, 0.0),
                     axis=-1, keepdims=True)                             # (tn, 1)

    nll = lse - picked                                                   # (tn, 1)

    if needs_mask:
        # Last tile overhangs N: zero invalid rows so garbage/NaN never leaks.
        row_ids = jax.lax.broadcasted_iota(jnp.int32, (tn, 1), 0)
        valid = (pl.program_id(0) * tile_n + row_ids) < n_total
        nll = jnp.where(valid, nll, 0.0)

    psum_ref[...] = jnp.sum(nll, axis=0, keepdims=True)                  # (1, 1)


def _choose_tile_n(n, c, dtype, total_budget_bytes, max_pred_tile_bytes=8 * _MIB):
    """Largest row tile whose total resident VMEM (double-buffered lane-padded
    pred + label tiles + in-kernel f32/i32 full-tile temporaries) fits the
    budget, with each pred tile buffer capped at ~8 MiB and rows rounded to the
    input dtype's sublane packing."""
    itemsize = jnp.dtype(dtype).itemsize
    pack = 8 * max(1, 4 // itemsize)          # 8 f32, 16 bf16, 32 int8/fp8
    c_pad = -(-c // 128) * 128                # lane-padded class dim in VMEM
    bytes_per_row = (
        2 * c_pad * itemsize                  # double-buffered pred tile (native dtype)
        + 2 * 128 * 4                         # double-buffered (tile_n, 1) int32 label tile (lane-padded)
        + 6 * c_pad * 4                       # in-kernel full-tile temporaries (f32 logits/shifted/exp, iota, ...)
    )
    cap = total_budget_bytes // bytes_per_row
    cap = min(cap, max_pred_tile_bytes // (c_pad * itemsize))
    cap = max(cap, pack)
    if n <= cap:
        return n                              # full-extent block: always legal
    return max(pack, (cap // pack) * pack)


def cite_criterion(pred, label):
    """Mean cross-entropy loss. pred: (N, C) float (any dtype), label: (N,) int."""
    n, c = pred.shape
    label2d = label.astype(jnp.int32).reshape(n, 1)
    itemsize = jnp.dtype(pred.dtype).itemsize

    # Generation-gated VMEM budget: v7x has 64 MiB/TensorCore, v5e/v6e have 128 MiB.
    try:
        vmem_cap = int(getattr(pltpu.get_tpu_info(), "vmem_capacity_bytes", 0)) or (64 * _MIB)
    except Exception:
        vmem_cap = 64 * _MIB                   # conservative fallback
    if vmem_cap <= 64 * _MIB:
        total_budget, vmem_limit = 40 * _MIB, 48 * _MIB
    else:
        total_budget, vmem_limit = 80 * _MIB, 96 * _MIB

    tile_n = _choose_tile_n(n, c, pred.dtype, total_budget)
    num_tiles = pl.cdiv(n, tile_n)
    needs_mask = (n % tile_n) != 0

    kernel = functools.partial(
        _ce_partial_sum_kernel, n_total=n, tile_n=tile_n, needs_mask=needs_mask)

    cost = pl.CostEstimate(
        flops=5 * n * c,                       # max/sub/exp-acc/compare/select-sum (rough)
        transcendentals=n * c,                 # exp
        bytes_accessed=n * c * itemsize + n * 4 + num_tiles * 4,
    )

    psums = pl.pallas_call(
        kernel,
        out_shape=jax.ShapeDtypeStruct((num_tiles, 1), jnp.float32),
        grid=(num_tiles,),
        in_specs=[
            pl.BlockSpec((tile_n, c), lambda i: (i, 0)),   # logits, native dtype
            pl.BlockSpec((tile_n, 1), lambda i: (i, 0)),   # labels
        ],
        out_specs=pl.BlockSpec((1, 1), lambda i: (i, 0)),  # one partial sum per grid step
        compiler_params=pltpu.CompilerParams(
            dimension_semantics=("parallel",),             # row tiles shard across v7x's 2 TCs
            vmem_limit_bytes=vmem_limit,
        ),
        cost_estimate=cost,
    )(pred, label2d)

    # Per-tile partial sums are already masked to the true N, so this tiny
    # (num_tiles,) reduction + divide is exact.
    return jnp.sum(psums) / jnp.float32(n)


if __name__ == "__main__":
    key = jax.random.PRNGKey(0)
    k_pred, k_label = jax.random.split(key)

    N, C = 8, 32  # small: 8 "nodes", 32 classes
    pred = jax.random.normal(k_pred, (N, C), dtype=jnp.float32)
    label = jax.random.randint(k_label, (N,), 0, C, dtype=jnp.int32)

    loss = cite_criterion(pred, label)
    jax.block_until_ready(loss)

    # sanity check against pure-JAX reference
    ref = jnp.mean(jax.nn.logsumexp(pred, axis=-1) - pred[jnp.arange(N), label])
    assert jnp.allclose(loss, ref, atol=1e-5, rtol=1e-5), (loss, ref)

    print("KERNEL_OK")
</pallas_src>

<mosaic_0001>
module attributes {stable_mosaic.version = 11 : i64} {
  func.func @_ce_partial_sum_kernel(%arg0: i32, %arg1: memref<8x32xf32, #tpu.memory_space<vmem>>, %arg2: memref<8x1xi32, #tpu.memory_space<vmem>>, %arg3: memref<1x1xf32, #tpu.memory_space<vmem>>) attributes {dimension_semantics = [#tpu.dimension_semantics<parallel>], iteration_bounds = array<i64: 1>, scalar_prefetch = 0 : i64, scratch_operands = 0 : i64, tpu.core_type = #tpu.core_type<tc>, window_params = [{transform_indices = @transform_0, window_bounds = array<i64: 8, 32>}, {transform_indices = @transform_1, window_bounds = array<i64: 8, 1>}, {transform_indices = @transform_2, window_bounds = array<i64: 1, 1>}]} {
    %c0 = arith.constant 0 : index
    %c0_0 = arith.constant 0 : index
    %0 = vector.load %arg1[%c0, %c0_0] : memref<8x32xf32, #tpu.memory_space<vmem>>, vector<8x32xf32>
    %cst = arith.constant dense<0xFF800000> : vector<8xf32>
    %1 = vector.multi_reduction <maximumf>, %0, %cst [1] : vector<8x32xf32> to vector<8xf32>
    %2 = vector.shape_cast %1 : vector<8xf32> to vector<8x1xf32>
    %3 = vector.broadcast %2 : vector<8x1xf32> to vector<8x32xf32>
    %4 = arith.subf %0, %3 : vector<8x32xf32>
    %5 = math.exp %4 : vector<8x32xf32>
    %cst_1 = arith.constant dense<0.000000e+00> : vector<8xf32>
    %6 = vector.multi_reduction <add>, %5, %cst_1 [1] : vector<8x32xf32> to vector<8xf32>
    %7 = vector.shape_cast %6 : vector<8xf32> to vector<8x1xf32>
    %8 = math.log %7 : vector<8x1xf32>
    %9 = tpu.iota {dimensions = array<i32: 1>} : vector<8x32xi32>
    %c0_2 = arith.constant 0 : index
    %c0_3 = arith.constant 0 : index
    %10 = vector.load %arg2[%c0_2, %c0_3] : memref<8x1xi32, #tpu.memory_space<vmem>>, vector<8x1xi32>
    %11 = vector.broadcast %10 : vector<8x1xi32> to vector<8x32xi32>
    %12 = arith.cmpi eq, %9, %11 : vector<8x32xi32>
    %cst_4 = arith.constant 0.000000e+00 : f32
    %13 = vector.broadcast %cst_4 : f32 to vector<8x32xf32>
    %14 = arith.select %12, %4, %13 : vector<8x32xi1>, vector<8x32xf32>
    %cst_5 = arith.constant dense<0.000000e+00> : vector<8xf32>
    %15 = vector.multi_reduction <add>, %14, %cst_5 [1] : vector<8x32xf32> to vector<8xf32>
    %16 = vector.shape_cast %15 : vector<8xf32> to vector<8x1xf32>
    %17 = arith.subf %8, %16 : vector<8x1xf32>
    %cst_6 = arith.constant dense<0.000000e+00> : vector<1xf32>
    %18 = vector.multi_reduction <add>, %17, %cst_6 [0] : vector<8x1xf32> to vector<1xf32>
    %19 = vector.shape_cast %18 : vector<1xf32> to vector<1x1xf32>
    %c0_7 = arith.constant 0 : index
    %c0_8 = arith.constant 0 : index
    %20 = vector.load %arg3[%c0_7, %c0_8] : memref<1x1xf32, #tpu.memory_space<vmem>>, vector<1x1xf32>
    tpu.vector_store %arg3[%c0_7, %c0_8], %19 {strides = array<i32>} : memref<1x1xf32, #tpu.memory_space<vmem>>, vector<1x1xf32>,
    return
  }
  func.func @transform_0(%arg0: i32) -> (i32, i32) {
    %c0_i32 = arith.constant 0 : i32
    %c0_i32_0 = arith.constant 0 : i32
    return %arg0, %c0_i32 : i32, i32
  }
  func.func @transform_1(%arg0: i32) -> (i32, i32) {
    %c0_i32 = arith.constant 0 : i32
    %c0_i32_0 = arith.constant 0 : i32
    return %arg0, %c0_i32 : i32, i32
  }
  func.func @transform_2(%arg0: i32) -> (i32, i32) {
    %c0_i32 = arith.constant 0 : i32
    %c0_i32_0 = arith.constant 0 : i32
    return %arg0, %c0_i32 : i32, i32
  }
}

</mosaic_0001>

<llo_original>
// kernel: tpu_custom_call.1
$region0: #{tpu_custom_call.1}
  #allocation0 [shape = 'u32[]', space=smem, size = 0x4, offset = 0x4, fixed_abs, tag = 'smem constant byte address 0x4 - core index']
  #allocation1 [shape = 'u32[144,128]{1,0:T(1,128)}', space=vmem, size = 0x12000, scoped, tag = 'internal scratch']
  %s0 = inlined_call_operand.vmem [shape: f32[8,32], index: 0, kind: input, shape index: {}]
  %s1 = inlined_call_operand.vmem [shape: s32[8,1], index: 1, kind: input, shape index: {}]
  %s2 = inlined_call_operand.hbm [shape: f32[1,1], index: 2, kind: output, shape index: {}]
  %s3 = sld [smem:[#allocation0]]
  $region18: #{tpu_custom_call.1} parent=0
    _
  %s5 = ssub.s32 1, %s3
  %s6 = scalar_select 0, %s5, %s3
  $region1: #{tpu_custom_call.1} parent=0
    #allocation2 [shape = 'u8[512]{0}', space=vmem, size = 0x400, scoped, tag = 'output window, operand 0, single buffered']
    #allocation3 [shape = 's32[1]{0}', space=sflag, size = 0x4, scoped, tag = 'scoped memory for tpu_custom_call.1']
    %7 = vsyncpa [#allocation3], 0
    // Predicated region
    $region2: #{tpu_custom_call.1} parent=1 // pred_check
      _
    $region3: #{tpu_custom_call.1} parent=1 // pred_check_branch
      %9 = sbr.rel (0) target = $region5
    $region4: #{tpu_custom_call.1} parent=1 // pred_region
      _
    $region5: #{tpu_custom_call.1} parent=1 // pred_fallthru
      _
    // Predicated region
    $region6: #{tpu_custom_call.1} parent=1 // pred_check
      _
    $region7: #{tpu_custom_call.1} parent=1 // pred_check_branch
      %11 = sbr.rel (0) target = $region9
    $region8: #{tpu_custom_call.1} parent=1 // pred_region
      _
    $region9: #{tpu_custom_call.1} parent=1 // pred_fallthru
      _
    %v12 = vld [vmem:[%s0] sm:$0xff]
    %vm13 = vcmask 261120
    %v14 = vsel %vm13, %v12, -inf
    %15 = vmax.xlane.f32.xlu0 %v14
    %v16 = vpop.xlane.xlu0 %15
    %v17 = vsub.f32 %v12, %v16
    %v18 = vmul.f32 %v17, 1.442695
    %v19 = vpow.pop %v18
    %v20 = vsel %vm13, %v19, 0.0
    %21 = vadd.xlane.f32.xlu0 %v20
    %v22 = vpop.xlane.xlu0 %21
    %v23 = vlog2.pop %v22
    %v24 = vmul.f32 %v23, 0.6931472
    %v25 = vlaneseq
    %v26 = vand.u32 %v25, 127
    %v27 = vld [vmem:[%s1] sm:$0xff]
    %28 = vset.pattern.permute.xlu0 0
    %29 = vperm.xlu0 %28, %v27
    %v30 = vpop.permute.xlu0 %29
    %vm31 = vcmp.eq.s32.totalorder %v26, %v30
    %v32 = vsel %vm31, %v17, 0.0
    %v33 = vsel %vm13, %v32, 0.0
    %34 = vadd.xlane.f32.xlu0 %v33
    %v35 = vpop.xlane.xlu0 %34
    %v36 = vsub.f32 %v24, %v35
    %v37 = vrot.slane %v36, 4
    %v38 = vadd.f32 %v36, %v37
    %v39 = vrot.slane %v38, 2
    %v40 = vadd.f32 %v38, %v39
    %v41 = vrot.slane %v40, 1
    %v42 = vadd.f32 %v40, %v41
    %vm43 = vcmask 0
    %44 = vst.msk [vmem:[#allocation2] sm:$0x1] %vm43, %v42
    // Predicated region
    $region10: #{tpu_custom_call.1} parent=1 // pred_check
      _
    $region11: #{tpu_custom_call.1} parent=1 // pred_check_branch
      %46 = sbr.rel (0) target = $region13
    $region12: #{tpu_custom_call.1} parent=1 // pred_region
      %s48 = ssub.s32 16, 16
      %49 = vsyncadd [#allocation3], %s48
      %s51 = sshll.u32 [#allocation2], 4
      %s52 = int_to_ptr.vmem [resolvable:$true] %s51
      %54 = dma.vmem_to_hbm [thread:$0]  %s52, 16, %s2, [#allocation3]
    $region13: #{tpu_custom_call.1} parent=1 // pred_fallthru
      _
    // Predicated region
    $region14: #{tpu_custom_call.1} parent=1 // pred_check
      _
    $region15: #{tpu_custom_call.1} parent=1 // pred_check_branch
      %56 = sbr.rel (0) target = $region17
    $region16: #{tpu_custom_call.1} parent=1 // pred_region
      %57 = dma.done [#allocation3], 16
    $region17: #{tpu_custom_call.1} parent=1 // pred_fallthru
      _
    %58 = vsyncpa [#allocation3], 1

</llo_original>
